<compile_context>
chip_gen: v7x
topology: tpu7x:2x2x1
jax: 0.10.0
libtpu: 0.0.40
codegen_flags: <defaults>
</compile_context>

<pallas_src>
import functools

import jax
import jax.numpy as jnp
from jax.experimental import pallas as pl
from jax.experimental.pallas import tpu as pltpu

NUM_CLASSES = 5

_BATCH_TILE = 2048                 # max rows per grid step (VMEM is far under budget)
_MIN_SPLIT = 256                   # >= 2*_MIN_SPLIT padded rows -> >= 2 grid steps (v7x)
_VMEM_BUDGET = 24 * 1024 * 1024    # conservative per-step budget (v7x TC has 64 MiB total)


def _round_up(a, m):
    return (a + m - 1) // m * m


def _sigmoid(x):
    # sigmoid(x) == 0.5*(tanh(x/2)+1): a single EUP transcendental per gate.
    return 0.5 * (jnp.tanh(0.5 * x) + 1.0)


# --------------------------------------------------------------------------- #
# Kernel
# --------------------------------------------------------------------------- #
def sleep_stage_kernel(x_ref, w0_ref, b0_ref, w1_ref, b1_ref, wfc_ref, bfc_ref,
                       out_ref, *, gate_width):
    """One batch tile: two fused bi-LSTM single-step layers + padded linear head."""
    G = gate_width                 # 128-lane-aligned width of one gate group
    cdt = w0_ref.dtype             # matmul operand dtype (f32, or bf16 on v6e/v7x)

    def fused_cell(gates):
        # gates: (B, 3G) f32, groups [i | g | o], each group = [*_fwd | *_bwd | 0-pad]
        # Group offsets are multiples of 128 -> whole-vreg slices, no lane masking.
        i = _sigmoid(gates[:, 0 * G:1 * G])
        g = jnp.tanh(gates[:, 1 * G:2 * G])
        o = _sigmoid(gates[:, 2 * G:3 * G])
        return o * jnp.tanh(i * g)          # (B, G); padded lanes are exactly 0

    # In-kernel operand cast: no extra HBM pass over x when the bf16 path is used.
    x = x_ref[...].astype(cdt)

    # ---- LSTM layer 0 (both directions, f-gate columns already dropped) ----
    g0 = jnp.dot(x, w0_ref[...], preferred_element_type=jnp.float32) + b0_ref[...]
    h0 = fused_cell(g0)                                              # (B, G) f32

    # ---- LSTM layer 1 ----
    g1 = jnp.dot(h0.astype(cdt), w1_ref[...],
                 preferred_element_type=jnp.float32) + b1_ref[...]
    h1 = fused_cell(g1)                                              # (B, G) f32

    # ---- Linear classifier (lane-dense, zero-padded to 128 columns) ----
    out = jnp.dot(h1.astype(cdt), wfc_ref[...],
                  preferred_element_type=jnp.float32) + bfc_ref[...]
    out_ref[...] = out.astype(out_ref.dtype)


# --------------------------------------------------------------------------- #
# One-time parameter packing (NOT per forward call)
# --------------------------------------------------------------------------- #
def pack_params(params, hidden_size, num_classes, compute_dtype=jnp.float32):
    """Pre-transpose / fuse / pad PyTorch-layout LSTM+Linear params for the kernel."""
    H = hidden_size
    H2 = 2 * H
    G = _round_up(H2, 128)          # lane-aligned gate-group width

    def gate_weight(w_fwd, w_bwd, in_pad, in_real):
        # (4H, in) PyTorch row blocks [i;f;g;o] -> (in_pad, 3G) columns
        # [i_fwd|i_bwd|0 | g_fwd|g_bwd|0 | o_fwd|o_bwd|0]; f is dead (c_prev == 0).
        w = jnp.zeros((in_pad, 3 * G), jnp.float32)
        for col, gi in enumerate((0, 2, 3)):            # i, g, o
            blk = jnp.concatenate([w_fwd[gi * H:(gi + 1) * H, :].T,
                                   w_bwd[gi * H:(gi + 1) * H, :].T], axis=1)
            w = w.at[:in_real, col * G:col * G + H2].set(blk)
        return w

    def gate_bias(b_fwd, b_bwd):
        b = jnp.zeros((1, 3 * G), jnp.float32)
        for col, gi in enumerate((0, 2, 3)):
            blk = jnp.concatenate([b_fwd[gi * H:(gi + 1) * H],
                                   b_bwd[gi * H:(gi + 1) * H]])
            b = b.at[0, col * G:col * G + H2].set(blk)
        return b

    d_in = params["w_ih_l0"].shape[1]
    b0f = params["b_ih_l0"] + params["b_hh_l0"]
    b0b = params["b_ih_l0_rev"] + params["b_hh_l0_rev"]
    b1f = params["b_ih_l1"] + params["b_hh_l1"]
    b1b = params["b_ih_l1_rev"] + params["b_hh_l1_rev"]

    w0 = gate_weight(params["w_ih_l0"], params["w_ih_l0_rev"], d_in, d_in)   # (D_in, 3G)
    b0 = gate_bias(b0f, b0b)                                                 # (1, 3G)
    w1 = gate_weight(params["w_ih_l1"], params["w_ih_l1_rev"], G, H2)        # (G, 3G)
    b1 = gate_bias(b1f, b1b)                                                 # (1, 3G)

    out_w = _round_up(num_classes, 128)                                      # lane-dense head
    wfc = jnp.zeros((G, out_w), jnp.float32)
    wfc = wfc.at[:H2, :num_classes].set(params["w_fc"].T)
    bfc = jnp.zeros((1, out_w), jnp.float32).at[0, :num_classes].set(params["b_fc"])

    # Only matmul operands take the compute dtype; biases (and all activation math
    # in-kernel) stay f32 — v5e's VPU/EUP have no bf16, accumulation is f32 anyway.
    w0, w1, wfc = (a.astype(compute_dtype) for a in (w0, w1, wfc))
    return (w0, b0, w1, b1, wfc, bfc)


# --------------------------------------------------------------------------- #
# Forward wrapper
# --------------------------------------------------------------------------- #
def sleep_stage_forward(x, packed, *, num_classes, out_dtype=jnp.float32):
    B, D_in = x.shape
    w0, b0, w1, b1, wfc, bfc = packed
    G3 = w0.shape[1]
    G = G3 // 3
    out_w = wfc.shape[1]

    # ---- batch tiling: pad only to sublane multiple, balanced tiles ----------
    sublane = 16 if w0.dtype == jnp.bfloat16 else 8
    pad_s = _round_up(B, sublane)

    # Computed VMEM cap: double-buffered x/out blocks + live f32 temporaries
    # (two (., 3G) gate slabs, ~three (., G) activation slabs) per row.
    bytes_per_row = (2 * D_in * jnp.dtype(w0.dtype).itemsize
                     + 2 * out_w * jnp.dtype(out_dtype).itemsize
                     + 2 * G3 * 4 + 3 * G * 4)
    tile_cap = max(sublane, (_VMEM_BUDGET // bytes_per_row) // sublane * sublane)
    max_tile = min(_BATCH_TILE, tile_cap)

    n_tiles = pl.cdiv(pad_s, max_tile)
    if pad_s >= 2 * _MIN_SPLIT:
        n_tiles = max(n_tiles, 2)          # both v7x TensorCores get a grid step
    tile_b = _round_up(pl.cdiv(pad_s, n_tiles), sublane)
    b_pad = n_tiles * tile_b               # <= pad_s + (n_tiles-1)*sublane

    if b_pad != B:
        x = jnp.pad(x, ((0, b_pad - B), (0, 0)))   # no dtype cast here (done in-kernel)

    def resident(shape):  # weights: same block every grid step -> stay in VMEM
        return pl.BlockSpec(shape, lambda i: (0, 0))

    kernel = functools.partial(sleep_stage_kernel, gate_width=G)
    out_padded = pl.pallas_call(
        kernel,
        out_shape=jax.ShapeDtypeStruct((b_pad, out_w), out_dtype),
        grid_spec=pltpu.PrefetchScalarGridSpec(
            num_scalar_prefetch=0,
            grid=(n_tiles,),
            in_specs=[
                pl.BlockSpec((tile_b, D_in), lambda i: (i, 0)),
                resident(w0.shape), resident(b0.shape),
                resident(w1.shape), resident(b1.shape),
                resident(wfc.shape), resident(bfc.shape),
            ],
            out_specs=pl.BlockSpec((tile_b, out_w), lambda i: (i, 0)),
        ),
        compiler_params=pltpu.CompilerParams(
            dimension_semantics=("parallel",),
            vmem_limit_bytes=32 * 1024 * 1024),
    )(x, w0, b0, w1, b1, wfc, bfc)
    return out_padded[:B, :num_classes]


# --------------------------------------------------------------------------- #
# Init + pure-JAX reference (PyTorch parameter layout)
# --------------------------------------------------------------------------- #
def init_params(key, input_size, hidden_size, num_classes):
    H = hidden_size
    k = 1.0 / jnp.sqrt(jnp.float32(H))
    names_shapes = [
        ("w_ih_l0", (4 * H, input_size)), ("w_hh_l0", (4 * H, H)),
        ("b_ih_l0", (4 * H,)), ("b_hh_l0", (4 * H,)),
        ("w_ih_l0_rev", (4 * H, input_size)), ("w_hh_l0_rev", (4 * H, H)),
        ("b_ih_l0_rev", (4 * H,)), ("b_hh_l0_rev", (4 * H,)),
        ("w_ih_l1", (4 * H, 2 * H)), ("w_hh_l1", (4 * H, H)),
        ("b_ih_l1", (4 * H,)), ("b_hh_l1", (4 * H,)),
        ("w_ih_l1_rev", (4 * H, 2 * H)), ("w_hh_l1_rev", (4 * H, H)),
        ("b_ih_l1_rev", (4 * H,)), ("b_hh_l1_rev", (4 * H,)),
        ("w_fc", (num_classes, 2 * H)), ("b_fc", (num_classes,)),
    ]
    params = {}
    keys = jax.random.split(key, len(names_shapes))
    for (name, shape), kk in zip(names_shapes, keys):
        params[name] = jax.random.uniform(kk, shape, jnp.float32, -k, k)
    return params


def reference_forward(x, params, hidden_size):
    H = hidden_size

    def cell(xin, w_ih, b_ih, b_hh):
        gates = xin @ w_ih.T + b_ih + b_hh
        i = jax.nn.sigmoid(gates[:, 0 * H:1 * H])
        g = jnp.tanh(gates[:, 2 * H:3 * H])
        o = jax.nn.sigmoid(gates[:, 3 * H:4 * H])
        return o * jnp.tanh(i * g)

    h0f = cell(x, params["w_ih_l0"], params["b_ih_l0"], params["b_hh_l0"])
    h0b = cell(x, params["w_ih_l0_rev"], params["b_ih_l0_rev"], params["b_hh_l0_rev"])
    x1 = jnp.concatenate([h0f, h0b], axis=-1)
    h1f = cell(x1, params["w_ih_l1"], params["b_ih_l1"], params["b_hh_l1"])
    h1b = cell(x1, params["w_ih_l1_rev"], params["b_ih_l1_rev"], params["b_hh_l1_rev"])
    feat = jnp.concatenate([h1f, h1b], axis=-1)
    return feat @ params["w_fc"].T + params["b_fc"]


if __name__ == "__main__":
    batch, input_size, hidden_size, num_classes = 4, 16, 32, NUM_CLASSES

    key = jax.random.PRNGKey(0)
    kx, kp = jax.random.split(key)
    x = jax.random.normal(kx, (batch, input_size), jnp.float32)
    params = init_params(kp, input_size, hidden_size, num_classes)

    # Pack weights exactly once (transpose / concat / f-gate drop / lane padding).
    # TODO(synk): for v6e/v7x production use compute_dtype=jnp.bfloat16 (and
    # out_dtype=jnp.bfloat16 to halve writeback); the 1e-5 self-test assumes f32.
    packed = pack_params(params, hidden_size, num_classes, compute_dtype=jnp.float32)

    forward = jax.jit(functools.partial(sleep_stage_forward, num_classes=num_classes))
    out = jax.block_until_ready(forward(x, packed))

    ref = reference_forward(x, params, hidden_size)
    assert out.shape == (batch, num_classes)
    assert jnp.allclose(out, ref, atol=1e-5, rtol=1e-5), "mismatch vs reference"

    print("KERNEL_OK")
</pallas_src>

<mosaic_0001>
module attributes {stable_mosaic.version = 11 : i64} {
  func.func @sleep_stage_kernel(%arg0: i32, %arg1: memref<8x16xf32, #tpu.memory_space<vmem>>, %arg2: memref<16x384xf32, #tpu.memory_space<vmem>>, %arg3: memref<1x384xf32, #tpu.memory_space<vmem>>, %arg4: memref<128x384xf32, #tpu.memory_space<vmem>>, %arg5: memref<1x384xf32, #tpu.memory_space<vmem>>, %arg6: memref<128x128xf32, #tpu.memory_space<vmem>>, %arg7: memref<1x128xf32, #tpu.memory_space<vmem>>, %arg8: memref<8x128xf32, #tpu.memory_space<vmem>>) attributes {dimension_semantics = [#tpu.dimension_semantics<parallel>], iteration_bounds = array<i64: 1>, scalar_prefetch = 0 : i64, scratch_operands = 0 : i64, tpu.core_type = #tpu.core_type<tc>, window_params = [{transform_indices = @transform_0, window_bounds = array<i64: 8, 16>}, {pipeline_mode = #tpu.pipeline_mode<synchronous>, transform_indices = @transform_1, window_bounds = array<i64: 16, 384>}, {pipeline_mode = #tpu.pipeline_mode<synchronous>, transform_indices = @transform_2, window_bounds = array<i64: 1, 384>}, {pipeline_mode = #tpu.pipeline_mode<synchronous>, transform_indices = @transform_3, window_bounds = array<i64: 128, 384>}, {pipeline_mode = #tpu.pipeline_mode<synchronous>, transform_indices = @transform_4, window_bounds = array<i64: 1, 384>}, {pipeline_mode = #tpu.pipeline_mode<synchronous>, transform_indices = @transform_5, window_bounds = array<i64: 128, 128>}, {pipeline_mode = #tpu.pipeline_mode<synchronous>, transform_indices = @transform_6, window_bounds = array<i64: 1, 128>}, {transform_indices = @transform_7, window_bounds = array<i64: 8, 128>}]} {
    %c0 = arith.constant 0 : index
    %c0_0 = arith.constant 0 : index
    %0 = vector.load %arg1[%c0, %c0_0] : memref<8x16xf32, #tpu.memory_space<vmem>>, vector<8x16xf32>
    %c0_1 = arith.constant 0 : index
    %c0_2 = arith.constant 0 : index
    %1 = vector.load %arg2[%c0_1, %c0_2] : memref<16x384xf32, #tpu.memory_space<vmem>>, vector<16x384xf32>
    %cst = arith.constant dense<0.000000e+00> : vector<8x384xf32>
    %2 = tpu.matmul %0, %1, %cst {dimension_numbers = #tpu.dot_dimension_numbers<[1], [0], [0], [1], [0, 0, 1, 1], [], []>} : vector<8x16xf32>, vector<16x384xf32>, vector<8x384xf32> -> vector<8x384xf32>
    %c0_3 = arith.constant 0 : index
    %c0_4 = arith.constant 0 : index
    %3 = vector.load %arg3[%c0_3, %c0_4] : memref<1x384xf32, #tpu.memory_space<vmem>>, vector<1x384xf32>
    %4 = vector.broadcast %3 : vector<1x384xf32> to vector<8x384xf32>
    %5 = arith.addf %2, %4 : vector<8x384xf32>
    %6 = vector.extract_strided_slice %5 {offsets = [0, 0], sizes = [8, 128], strides = [1, 1]} : vector<8x384xf32> to vector<8x128xf32>
    %cst_5 = arith.constant 5.000000e-01 : f32
    %7 = vector.broadcast %cst_5 : f32 to vector<8x128xf32>
    %8 = arith.mulf %7, %6 : vector<8x128xf32>
    %9 = math.tanh %8 : vector<8x128xf32>
    %cst_6 = arith.constant 1.000000e+00 : f32
    %10 = vector.broadcast %cst_6 : f32 to vector<8x128xf32>
    %11 = arith.addf %9, %10 : vector<8x128xf32>
    %cst_7 = arith.constant 5.000000e-01 : f32
    %12 = vector.broadcast %cst_7 : f32 to vector<8x128xf32>
    %13 = arith.mulf %12, %11 : vector<8x128xf32>
    %14 = vector.extract_strided_slice %5 {offsets = [0, 128], sizes = [8, 128], strides = [1, 1]} : vector<8x384xf32> to vector<8x128xf32>
    %15 = math.tanh %14 : vector<8x128xf32>
    %16 = vector.extract_strided_slice %5 {offsets = [0, 256], sizes = [8, 128], strides = [1, 1]} : vector<8x384xf32> to vector<8x128xf32>
    %cst_8 = arith.constant 5.000000e-01 : f32
    %17 = vector.broadcast %cst_8 : f32 to vector<8x128xf32>
    %18 = arith.mulf %17, %16 : vector<8x128xf32>
    %19 = math.tanh %18 : vector<8x128xf32>
    %cst_9 = arith.constant 1.000000e+00 : f32
    %20 = vector.broadcast %cst_9 : f32 to vector<8x128xf32>
    %21 = arith.addf %19, %20 : vector<8x128xf32>
    %cst_10 = arith.constant 5.000000e-01 : f32
    %22 = vector.broadcast %cst_10 : f32 to vector<8x128xf32>
    %23 = arith.mulf %22, %21 : vector<8x128xf32>
    %24 = arith.mulf %13, %15 : vector<8x128xf32>
    %25 = math.tanh %24 : vector<8x128xf32>
    %26 = arith.mulf %23, %25 : vector<8x128xf32>
    %c0_11 = arith.constant 0 : index
    %c0_12 = arith.constant 0 : index
    %27 = vector.load %arg4[%c0_11, %c0_12] : memref<128x384xf32, #tpu.memory_space<vmem>>, vector<128x384xf32>
    %cst_13 = arith.constant dense<0.000000e+00> : vector<8x384xf32>
    %28 = tpu.matmul %26, %27, %cst_13 {dimension_numbers = #tpu.dot_dimension_numbers<[1], [0], [0], [1], [0, 0, 1, 1], [], []>} : vector<8x128xf32>, vector<128x384xf32>, vector<8x384xf32> -> vector<8x384xf32>
    %c0_14 = arith.constant 0 : index
    %c0_15 = arith.constant 0 : index
    %29 = vector.load %arg5[%c0_14, %c0_15] : memref<1x384xf32, #tpu.memory_space<vmem>>, vector<1x384xf32>
    %30 = vector.broadcast %29 : vector<1x384xf32> to vector<8x384xf32>
    %31 = arith.addf %28, %30 : vector<8x384xf32>
    %32 = vector.extract_strided_slice %31 {offsets = [0, 0], sizes = [8, 128], strides = [1, 1]} : vector<8x384xf32> to vector<8x128xf32>
    %cst_16 = arith.constant 5.000000e-01 : f32
    %33 = vector.broadcast %cst_16 : f32 to vector<8x128xf32>
    %34 = arith.mulf %33, %32 : vector<8x128xf32>
    %35 = math.tanh %34 : vector<8x128xf32>
    %cst_17 = arith.constant 1.000000e+00 : f32
    %36 = vector.broadcast %cst_17 : f32 to vector<8x128xf32>
    %37 = arith.addf %35, %36 : vector<8x128xf32>
    %cst_18 = arith.constant 5.000000e-01 : f32
    %38 = vector.broadcast %cst_18 : f32 to vector<8x128xf32>
    %39 = arith.mulf %38, %37 : vector<8x128xf32>
    %40 = vector.extract_strided_slice %31 {offsets = [0, 128], sizes = [8, 128], strides = [1, 1]} : vector<8x384xf32> to vector<8x128xf32>
    %41 = math.tanh %40 : vector<8x128xf32>
    %42 = vector.extract_strided_slice %31 {offsets = [0, 256], sizes = [8, 128], strides = [1, 1]} : vector<8x384xf32> to vector<8x128xf32>
    %cst_19 = arith.constant 5.000000e-01 : f32
    %43 = vector.broadcast %cst_19 : f32 to vector<8x128xf32>
    %44 = arith.mulf %43, %42 : vector<8x128xf32>
    %45 = math.tanh %44 : vector<8x128xf32>
    %cst_20 = arith.constant 1.000000e+00 : f32
    %46 = vector.broadcast %cst_20 : f32 to vector<8x128xf32>
    %47 = arith.addf %45, %46 : vector<8x128xf32>
    %cst_21 = arith.constant 5.000000e-01 : f32
    %48 = vector.broadcast %cst_21 : f32 to vector<8x128xf32>
    %49 = arith.mulf %48, %47 : vector<8x128xf32>
    %50 = arith.mulf %39, %41 : vector<8x128xf32>
    %51 = math.tanh %50 : vector<8x128xf32>
    %52 = arith.mulf %49, %51 : vector<8x128xf32>
    %c0_22 = arith.constant 0 : index
    %c0_23 = arith.constant 0 : index
    %53 = vector.load %arg6[%c0_22, %c0_23] : memref<128x128xf32, #tpu.memory_space<vmem>>, vector<128x128xf32>
    %cst_24 = arith.constant dense<0.000000e+00> : vector<8x128xf32>
    %54 = tpu.matmul %52, %53, %cst_24 {dimension_numbers = #tpu.dot_dimension_numbers<[1], [0], [0], [1], [0, 0, 1, 1], [], []>} : vector<8x128xf32>, vector<128x128xf32>, vector<8x128xf32> -> vector<8x128xf32>
    %c0_25 = arith.constant 0 : index
    %c0_26 = arith.constant 0 : index
    %55 = vector.load %arg7[%c0_25, %c0_26] : memref<1x128xf32, #tpu.memory_space<vmem>>, vector<1x128xf32>
    %56 = vector.broadcast %55 : vector<1x128xf32> to vector<8x128xf32>
    %57 = arith.addf %54, %56 : vector<8x128xf32>
    %c0_27 = arith.constant 0 : index
    %c0_28 = arith.constant 0 : index
    %58 = vector.load %arg8[%c0_27, %c0_28] : memref<8x128xf32, #tpu.memory_space<vmem>>, vector<8x128xf32>
    tpu.vector_store %arg8[%c0_27, %c0_28], %57 {strides = array<i32>} : memref<8x128xf32, #tpu.memory_space<vmem>>, vector<8x128xf32>,
    return
  }
  func.func @transform_0(%arg0: i32) -> (i32, i32) {
    %c0_i32 = arith.constant 0 : i32
    %c0_i32_0 = arith.constant 0 : i32
    return %arg0, %c0_i32 : i32, i32
  }
  func.func @transform_1(%arg0: i32) -> (i32, i32) {
    %c0_i32 = arith.constant 0 : i32
    %c0_i32_0 = arith.constant 0 : i32
    %c0_i32_1 = arith.constant 0 : i32
    return %c0_i32, %c0_i32_0 : i32, i32
  }
  func.func @transform_2(%arg0: i32) -> (i32, i32) {
    %c0_i32 = arith.constant 0 : i32
    %c0_i32_0 = arith.constant 0 : i32
    %c0_i32_1 = arith.constant 0 : i32
    return %c0_i32, %c0_i32_0 : i32, i32
  }
  func.func @transform_3(%arg0: i32) -> (i32, i32) {
    %c0_i32 = arith.constant 0 : i32
    %c0_i32_0 = arith.constant 0 : i32
    %c0_i32_1 = arith.constant 0 : i32
    return %c0_i32, %c0_i32_0 : i32, i32
  }
  func.func @transform_4(%arg0: i32) -> (i32, i32) {
    %c0_i32 = arith.constant 0 : i32
    %c0_i32_0 = arith.constant 0 : i32
    %c0_i32_1 = arith.constant 0 : i32
    return %c0_i32, %c0_i32_0 : i32, i32
  }
  func.func @transform_5(%arg0: i32) -> (i32, i32) {
    %c0_i32 = arith.constant 0 : i32
    %c0_i32_0 = arith.constant 0 : i32
    %c0_i32_1 = arith.constant 0 : i32
    return %c0_i32, %c0_i32_0 : i32, i32
  }
  func.func @transform_6(%arg0: i32) -> (i32, i32) {
    %c0_i32 = arith.constant 0 : i32
    %c0_i32_0 = arith.constant 0 : i32
    %c0_i32_1 = arith.constant 0 : i32
    return %c0_i32, %c0_i32_0 : i32, i32
  }
  func.func @transform_7(%arg0: i32) -> (i32, i32) {
    %c0_i32 = arith.constant 0 : i32
    %c0_i32_0 = arith.constant 0 : i32
    return %arg0, %c0_i32 : i32, i32
  }
}

</mosaic_0001>

<llo_original>
// kernel: sleep_stage_forward.1
$region0: #{sleep_stage_forward.1}
  #allocation0 [shape = 'u32[]', space=smem, size = 0x4, offset = 0x4, fixed_abs, tag = 'smem constant byte address 0x4 - core index']
  #allocation1 [shape = 'u32[144,128]{1,0:T(1,128)}', space=vmem, size = 0x12000, scoped, tag = 'internal scratch']
  %s0 = inlined_call_operand.vmem [shape: f32[8,16], index: 0, kind: input, shape index: {}]
  %s1 = inlined_call_operand.hbm [shape: f32[16,384], index: 1, kind: input, shape index: {}]
  %s2 = inlined_call_operand.vmem [shape: f32[1,384], index: 2, kind: input, shape index: {}]
  %s3 = inlined_call_operand.hbm [shape: f32[128,384], index: 3, kind: input, shape index: {}]
  %s4 = inlined_call_operand.vmem [shape: f32[1,384], index: 4, kind: input, shape index: {}]
  %s5 = inlined_call_operand.hbm [shape: f32[128,128], index: 5, kind: input, shape index: {}]
  %s6 = inlined_call_operand.vmem [shape: f32[1,128], index: 6, kind: input, shape index: {}]
  %s7 = inlined_call_operand.vmem [shape: f32[8,128], index: 7, kind: output, shape index: {}]
  %s8 = sld [smem:[#allocation0]]
  $region50: #{sleep_stage_forward.1} parent=0
    _
  %s10 = ssub.s32 1, %s8
  %s11 = scalar_select 0, %s10, %s8
  $region1: #{sleep_stage_forward.1} parent=0
    #allocation2 [shape = 'u8[24576]{0}', space=vmem, size = 0x6000, scoped, tag = 'input window, operand 1, single buffered']
    #allocation3 [shape = 's32[1]{0}', space=sflag, size = 0x4, scoped, tag = 'scoped memory for sleep_stage_forward.1']
    #allocation4 [shape = 'u8[196608]{0}', space=vmem, size = 0x30000, scoped, tag = 'input window, operand 3, single buffered']
    #allocation5 [shape = 's32[1]{0}', space=sflag, size = 0x4, scoped, tag = 'scoped memory for sleep_stage_forward.1']
    #allocation6 [shape = 'u8[65536]{0}', space=vmem, size = 0x10000, scoped, tag = 'input window, operand 5, single buffered']
    %12 = vsyncpa [#allocation3], 0
    %13 = vsyncpa [#allocation5], 0
    // Predicated region
    $region2: #{sleep_stage_forward.1} parent=1 // pred_check
      _
    $region3: #{sleep_stage_forward.1} parent=1 // pred_check_branch
      %15 = sbr.rel (0) target = $region5
    $region4: #{sleep_stage_forward.1} parent=1 // pred_region
      _
    $region5: #{sleep_stage_forward.1} parent=1 // pred_fallthru
      _
    // Predicated region
    $region6: #{sleep_stage_forward.1} parent=1 // pred_check
      _
    $region7: #{sleep_stage_forward.1} parent=1 // pred_check_branch
      %17 = sbr.rel (0) target = $region9
    $region8: #{sleep_stage_forward.1} parent=1 // pred_region
      %s19 = ssub.s32 768, 768
      %20 = vsyncadd [#allocation3], %s19
      %s21 = sshll.u32 [#allocation2], 4
      %s22 = int_to_ptr.vmem [resolvable:$true] %s21
      %27 = dma.hbm_to_vmem [thread:$0]  %s1, 768, %s22, [#allocation3], 384, 384, 24
    $region9: #{sleep_stage_forward.1} parent=1 // pred_fallthru
      _
    // Predicated region
    $region10: #{sleep_stage_forward.1} parent=1 // pred_check
      _
    $region11: #{sleep_stage_forward.1} parent=1 // pred_check_branch
      %29 = sbr.rel (0) target = $region13
    $region12: #{sleep_stage_forward.1} parent=1 // pred_region
      _
    $region13: #{sleep_stage_forward.1} parent=1 // pred_fallthru
      _
    // Predicated region
    $region14: #{sleep_stage_forward.1} parent=1 // pred_check
      _
    $region15: #{sleep_stage_forward.1} parent=1 // pred_check_branch
      %31 = sbr.rel (0) target = $region17
    $region16: #{sleep_stage_forward.1} parent=1 // pred_region
      %s33 = ssub.s32 6144, 6144
      %34 = vsyncadd [#allocation5], %s33
      %s35 = sshll.u32 [#allocation4], 4
      %s36 = int_to_ptr.vmem [resolvable:$true] %s35
      %41 = dma.hbm_to_vmem [thread:$0]  %s3, 6144, %s36, [#allocation5], 384, 384, 24
    $region17: #{sleep_stage_forward.1} parent=1 // pred_fallthru
      _
    // Predicated region
    $region18: #{sleep_stage_forward.1} parent=1 // pred_check
      _
    $region19: #{sleep_stage_forward.1} parent=1 // pred_check_branch
      %43 = sbr.rel (0) target = $region21
    $region20: #{sleep_stage_forward.1} parent=1 // pred_region
      _
    $region21: #{sleep_stage_forward.1} parent=1 // pred_fallthru
      _
    // Predicated region
    $region22: #{sleep_stage_forward.1} parent=1 // pred_check
      _
    $region23: #{sleep_stage_forward.1} parent=1 // pred_check_branch
      %45 = sbr.rel (0) target = $region25
    $region24: #{sleep_stage_forward.1} parent=1 // pred_region
      %s47 = ssub.s32 2048, 2048
      %48 = vsyncadd [#allocation5], %s47
      %s49 = sshll.u32 [#allocation6], 4
      %s50 = int_to_ptr.vmem [resolvable:$true] %s49
      %55 = dma.hbm_to_vmem [thread:$0]  %s5, 2048, %s50, [#allocation5], 128, 128, 8
    $region25: #{sleep_stage_forward.1} parent=1 // pred_fallthru
      _
    // Predicated region
    $region26: #{sleep_stage_forward.1} parent=1 // pred_check
      _
    $region27: #{sleep_stage_forward.1} parent=1 // pred_check_branch
      %57 = sbr.rel (0) target = $region29
    $region28: #{sleep_stage_forward.1} parent=1 // pred_region
      _
    $region29: #{sleep_stage_forward.1} parent=1 // pred_fallthru
      _
    // Predicated region
    $region30: #{sleep_stage_forward.1} parent=1 // pred_check
      _
    $region31: #{sleep_stage_forward.1} parent=1 // pred_check_branch
      %59 = sbr.rel (0) target = $region33
    $region32: #{sleep_stage_forward.1} parent=1 // pred_region
      %60 = dma.done [#allocation3], 768
    $region33: #{sleep_stage_forward.1} parent=1 // pred_fallthru
      _
    // Predicated region
    $region34: #{sleep_stage_forward.1} parent=1 // pred_check
      _
    $region35: #{sleep_stage_forward.1} parent=1 // pred_check_branch
      %62 = sbr.rel (0) target = $region37
    $region36: #{sleep_stage_forward.1} parent=1 // pred_region
      %63 = dma.done [#allocation5], 6144
    $region37: #{sleep_stage_forward.1} parent=1 // pred_fallthru
      _
    // Predicated region
    $region38: #{sleep_stage_forward.1} parent=1 // pred_check
      _
    $region39: #{sleep_stage_forward.1} parent=1 // pred_check_branch
      %65 = sbr.rel (0) target = $region41
    $region40: #{sleep_stage_forward.1} parent=1 // pred_region
      %66 = dma.done [#allocation5], 2048
    $region41: #{sleep_stage_forward.1} parent=1 // pred_fallthru
      _
    %v67 = vld [vmem:[%s0] sm:$0xff]
    %v68 = vld [vmem:[#allocation2] sm:$0xff]
    %v69 = vld [vmem:[#allocation2 + $0x8] sm:$0xff]
    %v70 = vld [vmem:[#allocation2 + $0x10] sm:$0xff]
    %v71 = vld [vmem:[#allocation2 + $0x18] sm:$0xff]
    %v72 = vld [vmem:[#allocation2 + $0x20] sm:$0xff]
    %v73 = vld [vmem:[#allocation2 + $0x28] sm:$0xff]
    %v74 = vld [vmem:[%s2] sm:$0x7]
    %v76 = vlaneseq
    %v77 = vshrl.u32 %v76, 7
    %v78 = vsub.s32 0, %v77
    %v79 = vrot.slane %v74, %v78
    %v80 = vlaneseq
    %v81 = vshrl.u32 %v80, 7
    %v82 = vsub.s32 1, %v81
    %v83 = vrot.slane %v74, %v82
    %v84 = vlaneseq
    %v85 = vshrl.u32 %v84, 7
    %v86 = vsub.s32 2, %v85
    %v87 = vrot.slane %v74, %v86
    %vm91 = vcmask 130048
    %v93 = vsel %vm91, %v67, 0
    %95 = vmatprep.subr.mxu0 %v69
    %96 = vmatpush1.msra.mxu0 %v68
    %97 = vmatprep.subr.mxu0 %v72
    %98 = vmatpush1.msra.mxu0 %v71
    %99 = vmatprep.subr.mxu0 0.0
    %100 = vmatpush1.msra.mxu0 0.0
    %101 = vmatprep.subr.mxu0 0.0
    %102 = vmatpush1.msra.mxu0 0.0
    %103 = vmatprep.subr.mxu0 0.0
    %104 = vmatpush1.msra.mxu0 0.0
    %105 = vmatprep.subr.mxu0 0.0
    %106 = vmatpush1.msra.mxu0 0.0
    %107 = vmatprep.subr.mxu0 0.0
    %108 = vmatpush1.msra.mxu0 0.0
    %109 = vmatprep.subr.mxu0 0.0
    %110 = vmatpush1.msra.mxu0 0.0
    %111 = vmatprep.subr.mxu0 0.0
    %112 = vmatpush1.msra.mxu0 0.0
    %113 = vmatprep.subr.mxu0 0.0
    %114 = vmatpush1.msra.mxu0 0.0
    %115 = vmatprep.subr.mxu0 0.0
    %116 = vmatpush1.msra.mxu0 0.0
    %117 = vmatprep.subr.mxu0 0.0
    %118 = vmatpush1.msra.mxu0 0.0
    %119 = vmatprep.subr.mxu0 0.0
    %120 = vmatpush1.msra.mxu0 0.0
    %121 = vmatprep.subr.mxu0 0.0
    %122 = vmatpush1.msra.mxu0 0.0
    %123 = vmatprep.subr.mxu0 0.0
    %124 = vmatpush1.msra.mxu0 0.0
    %125 = vmatprep.subr.mxu0 0.0
    %126 = vmatpush1.msra.mxu0 0.0
    %127 = vmatprep.subr.mxu0 0.0
    %128 = vmatpush1.msra.mxu0 0.0
    %129 = vmatprep.subr.mxu0 0.0
    %130 = vmatpush1.msra.mxu0 0.0
    %131 = vmatprep.subr.mxu0 0.0
    %132 = vmatpush1.msra.mxu0 0.0
    %133 = vmatprep.subr.mxu0 0.0
    %134 = vmatpush1.msra.mxu0 0.0
    %135 = vmatprep.subr.mxu0 0.0
    %136 = vmatpush1.msra.mxu0 0.0
    %137 = vmatprep.subr.mxu0 0.0
    %138 = vmatpush1.msra.mxu0 0.0
    %139 = vmatprep.subr.mxu0 0.0
    %140 = vmatpush1.msra.mxu0 0.0
    %141 = vmatprep.subr.mxu0 0.0
    %142 = vmatpush1.msra.mxu0 0.0
    %143 = vmatprep.subr.mxu0 0.0
    %144 = vmatpush1.msra.mxu0 0.0
    %145 = vmatprep.subr.mxu0 0.0
    %146 = vmatpush1.msra.mxu0 0.0
    %147 = vmatprep.subr.mxu0 0.0
    %148 = vmatpush1.msra.mxu0 0.0
    %149 = vmatprep.subr.mxu0 0.0
    %150 = vmatpush1.msra.mxu0 0.0
    %151 = vmatprep.subr.mxu0 0.0
    %152 = vmatpush1.msra.mxu0 0.0
    %153 = vmatprep.subr.mxu0 0.0
    %154 = vmatpush1.msra.mxu0 0.0
    %155 = vmatprep.subr.mxu0 0.0
    %156 = vmatpush1.msra.mxu0 0.0
    %157 = vmatprep.subr.mxu0 0.0
    %158 = vmatpush1.msra.mxu0 0.0
    %159 = vmatprep.mubr.f32.mxu0 0.0
    %160 = vmatmul.mubr.f32.gmra.mrb[0].mxu0 %v93
    %v161 = vpop.f32.mrb[0].mxu0
    %v162 = vadd.f32 %v79, %v161
    %v163 = vpop.f32.mrb[0].mxu0
    %v164 = vadd.f32 %v83, %v163
    %165 = vdwg.mxu0
    %166 = vmatprep.subr.mxu0 0.0
    %167 = vmatpush1.msra.mxu0 %v70
    %168 = vmatprep.subr.mxu0 0.0
    %169 = vmatpush1.msra.mxu0 %v73
    %170 = vmatprep.subr.mxu0 0.0
    %171 = vmatpush1.msra.mxu0 0.0
    %172 = vmatprep.subr.mxu0 0.0
    %173 = vmatpush1.msra.mxu0 0.0
    %174 = vmatprep.subr.mxu0 0.0
    %175 = vmatpush1.msra.mxu0 0.0
    %176 = vmatprep.subr.mxu0 0.0
    %177 = vmatpush1.msra.mxu0 0.0
    %178 = vmatprep.subr.mxu0 0.0
    %179 = vmatpush1.msra.mxu0 0.0
    %180 = vmatprep.subr.mxu0 0.0
    %181 = vmatpush1.msra.mxu0 0.0
    %182 = vmatprep.subr.mxu0 0.0
    %183 = vmatpush1.msra.mxu0 0.0
    %184 = vmatprep.subr.mxu0 0.0
    %185 = vmatpush1.msra.mxu0 0.0
    %186 = vmatprep.subr.mxu0 0.0
    %187 = vmatpush1.msra.mxu0 0.0
    %188 = vmatprep.subr.mxu0 0.0
    %189 = vmatpush1.msra.mxu0 0.0
    %190 = vmatprep.subr.mxu0 0.0
    %191 = vmatpush1.msra.mxu0 0.0
    %192 = vmatprep.subr.mxu0 0.0
    %193 = vmatpush1.msra.mxu0 0.0
    %194 = vmatprep.subr.mxu0 0.0
    %195 = vmatpush1.msra.mxu0 0.0
    %196 = vmatprep.subr.mxu0 0.0
    %197 = vmatpush1.msra.mxu0 0.0
    %198 = vmatprep.subr.mxu0 0.0
    %199 = vmatpush1.msra.mxu0 0.0
    %200 = vmatprep.subr.mxu0 0.0
    %201 = vmatpush1.msra.mxu0 0.0
    %202 = vmatprep.subr.mxu0 0.0
    %203 = vmatpush1.msra.mxu0 0.0
    %204 = vmatprep.subr.mxu0 0.0
    %205 = vmatpush1.msra.mxu0 0.0
    %206 = vmatprep.subr.mxu0 0.0
    %207 = vmatpush1.msra.mxu0 0.0
    %208 = vmatprep.subr.mxu0 0.0
    %209 = vmatpush1.msra.mxu0 0.0
    %210 = vmatprep.subr.mxu0 0.0
    %211 = vmatpush1.msra.mxu0 0.0
    %212 = vmatprep.subr.mxu0 0.0
    %213 = vmatpush1.msra.mxu0 0.0
    %214 = vmatprep.subr.mxu0 0.0
    %215 = vmatpush1.msra.mxu0 0.0
    %216 = vmatprep.subr.mxu0 0.0
    %217 = vmatpush1.msra.mxu0 0.0
    %218 = vmatprep.subr.mxu0 0.0
    %219 = vmatpush1.msra.mxu0 0.0
    %220 = vmatprep.subr.mxu0 0.0
    %221 = vmatpush1.msra.mxu0 0.0
    %222 = vmatprep.subr.mxu0 0.0
    %223 = vmatpush1.msra.mxu0 0.0
    %224 = vmatprep.subr.mxu0 0.0
    %225 = vmatpush1.msra.mxu0 0.0
    %226 = vmatprep.subr.mxu0 0.0
    %227 = vmatpush1.msra.mxu0 0.0
    %228 = vmatprep.subr.mxu0 0.0
    %229 = vmatpush1.msra.mxu0 0.0
    %230 = vmatprep.mubr.f32.mxu0 0.0
    %231 = vmatmul.mubr.f32.gmra.mrb[0].mxu0 %v93
    %v232 = vpop.f32.mrb[0].mxu0
    %v233 = vadd.f32 %v87, %v232
    %v234 = vpop.f32.mrb[0].mxu0
    %235 = vdwg.mxu0
    %v236 = vmul.f32 %v162, 0.5
    %v237 = vtanh.pop %v236
    %v238 = vadd.f32 %v237, 1.0
    %v239 = vmul.f32 %v238, 0.5
    %v240 = vtanh.pop %v164
    %v241 = vmul.f32 %v233, 0.5
    %v242 = vtanh.pop %v241
    %v243 = vadd.f32 %v242, 1.0
    %v244 = vmul.f32 %v243, 0.5
    %v245 = vmul.f32 %v239, %v240
    %v246 = vtanh.pop %v245
    %v247 = vmul.f32 %v244, %v246
    %v248 = vld [vmem:[#allocation4] sm:$0xff]
    %v249 = vld [vmem:[#allocation4 + $0x8] sm:$0xff]
    %v250 = vld [vmem:[#allocation4 + $0x10] sm:$0xff]
    %v251 = vld [vmem:[#allocation4 + $0x18] sm:$0xff]
    %v252 = vld [vmem:[#allocation4 + $0x20] sm:$0xff]
    %v253 = vld [vmem:[#allocation4 + $0x28] sm:$0xff]
    %v254 = vld [vmem:[#allocation4 + $0x30] sm:$0xff]
    %v255 = vld [vmem:[#allocation4 + $0x38] sm:$0xff]
    %v256 = vld [vmem:[#allocation4 + $0x40] sm:$0xff]
    %v257 = vld [vmem:[#allocation4 + $0x48] sm:$0xff]
    %v258 = vld [vmem:[#allocation4 + $0x50] sm:$0xff]
    %v259 = vld [vmem:[#allocation4 + $0x58] sm:$0xff]
    %v260 = vld [vmem:[#allocation4 + $0x60] sm:$0xff]
    %v261 = vld [vmem:[#allocation4 + $0x68] sm:$0xff]
    %v262 = vld [vmem:[#allocation4 + $0x70] sm:$0xff]
    %v263 = vld [vmem:[#allocation4 + $0x78] sm:$0xff]
    %v264 = vld [vmem:[#allocation4 + $0x80] sm:$0xff]
    %v265 = vld [vmem:[#allocation4 + $0x88] sm:$0xff]
    %v266 = vld [vmem:[#allocation4 + $0x90] sm:$0xff]
    %v267 = vld [vmem:[#allocation4 + $0x98] sm:$0xff]
    %v268 = vld [vmem:[#allocation4 + $0xa0] sm:$0xff]
    %v269 = vld [vmem:[#allocation4 + $0xa8] sm:$0xff]
    %v270 = vld [vmem:[#allocation4 + $0xb0] sm:$0xff]
    %v271 = vld [vmem:[#allocation4 + $0xb8] sm:$0xff]
    %v272 = vld [vmem:[#allocation4 + $0xc0] sm:$0xff]
    %v273 = vld [vmem:[#allocation4 + $0xc8] sm:$0xff]
    %v274 = vld [vmem:[#allocation4 + $0xd0] sm:$0xff]
    %v275 = vld [vmem:[#allocation4 + $0xd8] sm:$0xff]
    %v276 = vld [vmem:[#allocation4 + $0xe0] sm:$0xff]
    %v277 = vld [vmem:[#allocation4 + $0xe8] sm:$0xff]
    %v278 = vld [vmem:[#allocation4 + $0xf0] sm:$0xff]
    %v279 = vld [vmem:[#allocation4 + $0xf8] sm:$0xff]
    %v280 = vld [vmem:[#allocation4 + $0x100] sm:$0xff]
    %v281 = vld [vmem:[#allocation4 + $0x108] sm:$0xff]
    %v282 = vld [vmem:[#allocation4 + $0x110] sm:$0xff]
    %v283 = vld [vmem:[#allocation4 + $0x118] sm:$0xff]
    %v284 = vld [vmem:[#allocation4 + $0x120] sm:$0xff]
    %v285 = vld [vmem:[#allocation4 + $0x128] sm:$0xff]
    %v286 = vld [vmem:[#allocation4 + $0x130] sm:$0xff]
    %v287 = vld [vmem:[#allocation4 + $0x138] sm:$0xff]
    %v288 = vld [vmem:[#allocation4 + $0x140] sm:$0xff]
    %v289 = vld [vmem:[#allocation4 + $0x148] sm:$0xff]
    %v290 = vld [vmem:[#allocation4 + $0x150] sm:$0xff]
    %v291 = vld [vmem:[#allocation4 + $0x158] sm:$0xff]
    %v292 = vld [vmem:[#allocation4 + $0x160] sm:$0xff]
    %v293 = vld [vmem:[#allocation4 + $0x168] sm:$0xff]
    %v294 = vld [vmem:[#allocation4 + $0x170] sm:$0xff]
    %v295 = vld [vmem:[#allocation4 + $0x178] sm:$0xff]
    %v296 = vld [vmem:[%s4] sm:$0x7]
    %v298 = vlaneseq
    %v299 = vshrl.u32 %v298, 7
    %v300 = vsub.s32 0, %v299
    %v301 = vrot.slane %v296, %v300
    %v302 = vlaneseq
    %v303 = vshrl.u32 %v302, 7
    %v304 = vsub.s32 1, %v303
    %v305 = vrot.slane %v296, %v304
    %v306 = vlaneseq
    %v307 = vshrl.u32 %v306, 7
    %v308 = vsub.s32 2, %v307
    %v309 = vrot.slane %v296, %v308
    %313 = vmatprep.subr.mxu0 %v249
    %314 = vmatpush1.msra.mxu0 %v248
    %315 = vmatprep.subr.mxu0 %v252
    %316 = vmatpush1.msra.mxu0 %v251
    %317 = vmatprep.subr.mxu0 %v255
    %318 = vmatpush1.msra.mxu0 %v254
    %319 = vmatprep.subr.mxu0 %v258
    %320 = vmatpush1.msra.mxu0 %v257
    %321 = vmatprep.subr.mxu0 %v261
    %322 = vmatpush1.msra.mxu0 %v260
    %323 = vmatprep.subr.mxu0 %v264
    %324 = vmatpush1.msra.mxu0 %v263
    %325 = vmatprep.subr.mxu0 %v267
    %326 = vmatpush1.msra.mxu0 %v266
    %327 = vmatprep.subr.mxu0 %v270
    %328 = vmatpush1.msra.mxu0 %v269
    %329 = vmatprep.subr.mxu0 %v273
    %330 = vmatpush1.msra.mxu0 %v272
    %331 = vmatprep.subr.mxu0 %v276
    %332 = vmatpush1.msra.mxu0 %v275
    %333 = vmatprep.subr.mxu0 %v279
    %334 = vmatpush1.msra.mxu0 %v278
    %335 = vmatprep.subr.mxu0 %v282
    %336 = vmatpush1.msra.mxu0 %v281
    %337 = vmatprep.subr.mxu0 %v285
    %338 = vmatpush1.msra.mxu0 %v284
    %339 = vmatprep.subr.mxu0 %v288
    %340 = vmatpush1.msra.mxu0 %v287
    %341 = vmatprep.subr.mxu0 %v291
    %342 = vmatpush1.msra.mxu0 %v290
    %343 = vmatprep.subr.mxu0 %v294
    %344 = vmatpush1.msra.mxu0 %v293
    %345 = vmatprep.subr.mxu0 0.0
    %346 = vmatpush1.msra.mxu0 0.0
    %347 = vmatprep.subr.mxu0 0.0
    %348 = vmatpush1.msra.mxu0 0.0
    %349 = vmatprep.subr.mxu0 0.0
    %350 = vmatpush1.msra.mxu0 0.0
    %351 = vmatprep.subr.mxu0 0.0
    %352 = vmatpush1.msra.mxu0 0.0
    %353 = vmatprep.subr.mxu0 0.0
    %354 = vmatpush1.msra.mxu0 0.0
    %355 = vmatprep.subr.mxu0 0.0
    %356 = vmatpush1.msra.mxu0 0.0
    %357 = vmatprep.subr.mxu0 0.0
    %358 = vmatpush1.msra.mxu0 0.0
    %359 = vmatprep.subr.mxu0 0.0
    %360 = vmatpush1.msra.mxu0 0.0
    %361 = vmatprep.subr.mxu0 0.0
    %362 = vmatpush1.msra.mxu0 0.0
    %363 = vmatprep.subr.mxu0 0.0
    %364 = vmatpush1.msra.mxu0 0.0
    %365 = vmatprep.subr.mxu0 0.0
    %366 = vmatpush1.msra.mxu0 0.0
    %367 = vmatprep.subr.mxu0 0.0
    %368 = vmatpush1.msra.mxu0 0.0
    %369 = vmatprep.subr.mxu0 0.0
    %370 = vmatpush1.msra.mxu0 0.0
    %371 = vmatprep.subr.mxu0 0.0
    %372 = vmatpush1.msra.mxu0 0.0
    %373 = vmatprep.subr.mxu0 0.0
    %374 = vmatpush1.msra.mxu0 0.0
    %375 = vmatprep.subr.mxu0 0.0
    %376 = vmatpush1.msra.mxu0 0.0
    %377 = vmatprep.mubr.f32.mxu0 0.0
    %378 = vmatmul.mubr.f32.gmra.mrb[0].mxu0 %v247
    %v379 = vpop.f32.mrb[0].mxu0
    %v380 = vadd.f32 %v301, %v379
    %v381 = vpop.f32.mrb[0].mxu0
    %v382 = vadd.f32 %v305, %v381
    %383 = vdwg.mxu0
    %384 = vmatprep.subr.mxu0 0.0
    %385 = vmatpush1.msra.mxu0 %v250
    %386 = vmatprep.subr.mxu0 0.0
    %387 = vmatpush1.msra.mxu0 %v253
    %388 = vmatprep.subr.mxu0 0.0
    %389 = vmatpush1.msra.mxu0 %v256
    %390 = vmatprep.subr.mxu0 0.0
    %391 = vmatpush1.msra.mxu0 %v259
    %392 = vmatprep.subr.mxu0 0.0
    %393 = vmatpush1.msra.mxu0 %v262
    %394 = vmatprep.subr.mxu0 0.0
    %395 = vmatpush1.msra.mxu0 %v265
    %396 = vmatprep.subr.mxu0 0.0
    %397 = vmatpush1.msra.mxu0 %v268
    %398 = vmatprep.subr.mxu0 0.0
    %399 = vmatpush1.msra.mxu0 %v271
    %400 = vmatprep.subr.mxu0 0.0
    %401 = vmatpush1.msra.mxu0 %v274
    %402 = vmatprep.subr.mxu0 0.0
    %403 = vmatpush1.msra.mxu0 %v277
    %404 = vmatprep.subr.mxu0 0.0
    %405 = vmatpush1.msra.mxu0 %v280
    %406 = vmatprep.subr.mxu0 0.0
    %407 = vmatpush1.msra.mxu0 %v283
    %408 = vmatprep.subr.mxu0 0.0
    %409 = vmatpush1.msra.mxu0 %v286
    %410 = vmatprep.subr.mxu0 0.0
    %411 = vmatpush1.msra.mxu0 %v289
    %412 = vmatprep.subr.mxu0 0.0
    %413 = vmatpush1.msra.mxu0 %v292
    %414 = vmatprep.subr.mxu0 0.0
    %415 = vmatpush1.msra.mxu0 %v295
    %416 = vmatprep.subr.mxu0 0.0
    %417 = vmatpush1.msra.mxu0 0.0
    %418 = vmatprep.subr.mxu0 0.0
    %419 = vmatpush1.msra.mxu0 0.0
    %420 = vmatprep.subr.mxu0 0.0
    %421 = vmatpush1.msra.mxu0 0.0
    %422 = vmatprep.subr.mxu0 0.0
    %423 = vmatpush1.msra.mxu0 0.0
    %424 = vmatprep.subr.mxu0 0.0
    %425 = vmatpush1.msra.mxu0 0.0
    %426 = vmatprep.subr.mxu0 0.0
    %427 = vmatpush1.msra.mxu0 0.0
    %428 = vmatprep.subr.mxu0 0.0
    %429 = vmatpush1.msra.mxu0 0.0
    %430 = vmatprep.subr.mxu0 0.0
    %431 = vmatpush1.msra.mxu0 0.0
    %432 = vmatprep.subr.mxu0 0.0
    %433 = vmatpush1.msra.mxu0 0.0
    %434 = vmatprep.subr.mxu0 0.0
    %435 = vmatpush1.msra.mxu0 0.0
    %436 = vmatprep.subr.mxu0 0.0
    %437 = vmatpush1.msra.mxu0 0.0
    %438 = vmatprep.subr.mxu0 0.0
    %439 = vmatpush1.msra.mxu0 0.0
    %440 = vmatprep.subr.mxu0 0.0
    %441 = vmatpush1.msra.mxu0 0.0
    %442 = vmatprep.subr.mxu0 0.0
    %443 = vmatpush1.msra.mxu0 0.0
    %444 = vmatprep.subr.mxu0 0.0
    %445 = vmatpush1.msra.mxu0 0.0
    %446 = vmatprep.subr.mxu0 0.0
    %447 = vmatpush1.msra.mxu0 0.0
    %448 = vmatprep.mubr.f32.mxu0 0.0
    %449 = vmatmul.mubr.f32.gmra.mrb[0].mxu0 %v247
    %v450 = vpop.f32.mrb[0].mxu0
    %v451 = vadd.f32 %v309, %v450
    %v452 = vpop.f32.mrb[0].mxu0
    %453 = vdwg.mxu0
    %v454 = vmul.f32 %v380, 0.5
    %v455 = vtanh.pop %v454
    %v456 = vadd.f32 %v455, 1.0
    %v457 = vmul.f32 %v456, 0.5
    %v458 = vtanh.pop %v382
    %v459 = vmul.f32 %v451, 0.5
    %v460 = vtanh.pop %v459
    %v461 = vadd.f32 %v460, 1.0
    %v462 = vmul.f32 %v461, 0.5
    %v463 = vmul.f32 %v457, %v458
    %v464 = vtanh.pop %v463
    %v465 = vmul.f32 %v462, %v464
    %v466 = vld [vmem:[#allocation6] sm:$0xff]
    %v467 = vld [vmem:[#allocation6 + $0x8] sm:$0xff]
    %v468 = vld [vmem:[#allocation6 + $0x10] sm:$0xff]
    %v469 = vld [vmem:[#allocation6 + $0x18] sm:$0xff]
    %v470 = vld [vmem:[#allocation6 + $0x20] sm:$0xff]
    %v471 = vld [vmem:[#allocation6 + $0x28] sm:$0xff]
    %v472 = vld [vmem:[#allocation6 + $0x30] sm:$0xff]
    %v473 = vld [vmem:[#allocation6 + $0x38] sm:$0xff]
    %v474 = vld [vmem:[#allocation6 + $0x40] sm:$0xff]
    %v475 = vld [vmem:[#allocation6 + $0x48] sm:$0xff]
    %v476 = vld [vmem:[#allocation6 + $0x50] sm:$0xff]
    %v477 = vld [vmem:[#allocation6 + $0x58] sm:$0xff]
    %v478 = vld [vmem:[#allocation6 + $0x60] sm:$0xff]
    %v479 = vld [vmem:[#allocation6 + $0x68] sm:$0xff]
    %v480 = vld [vmem:[#allocation6 + $0x70] sm:$0xff]
    %v481 = vld [vmem:[#allocation6 + $0x78] sm:$0xff]
    %v482 = vld [vmem:[%s6] sm:$0x1]
    %v484 = vlaneseq
    %v485 = vshrl.u32 %v484, 7
    %v486 = vsub.s32 0, %v485
    %v487 = vrot.slane %v482, %v486
    %489 = vmatprep.subr.mxu0 0.0
    %490 = vmatpush1.msra.mxu0 %v466
    %491 = vmatprep.subr.mxu0 0.0
    %492 = vmatpush1.msra.mxu0 %v467
    %493 = vmatprep.subr.mxu0 0.0
    %494 = vmatpush1.msra.mxu0 %v468
    %495 = vmatprep.subr.mxu0 0.0
    %496 = vmatpush1.msra.mxu0 %v469
    %497 = vmatprep.subr.mxu0 0.0
    %498 = vmatpush1.msra.mxu0 %v470
    %499 = vmatprep.subr.mxu0 0.0
    %500 = vmatpush1.msra.mxu0 %v471
    %501 = vmatprep.subr.mxu0 0.0
    %502 = vmatpush1.msra.mxu0 %v472
    %503 = vmatprep.subr.mxu0 0.0
    %504 = vmatpush1.msra.mxu0 %v473
    %505 = vmatprep.subr.mxu0 0.0
    %506 = vmatpush1.msra.mxu0 %v474
    %507 = vmatprep.subr.mxu0 0.0
    %508 = vmatpush1.msra.mxu0 %v475
    %509 = vmatprep.subr.mxu0 0.0
    %510 = vmatpush1.msra.mxu0 %v476
    %511 = vmatprep.subr.mxu0 0.0
    %512 = vmatpush1.msra.mxu0 %v477
    %513 = vmatprep.subr.mxu0 0.0
    %514 = vmatpush1.msra.mxu0 %v478
    %515 = vmatprep.subr.mxu0 0.0
    %516 = vmatpush1.msra.mxu0 %v479
    %517 = vmatprep.subr.mxu0 0.0
    %518 = vmatpush1.msra.mxu0 %v480
    %519 = vmatprep.subr.mxu0 0.0
    %520 = vmatpush1.msra.mxu0 %v481
    %521 = vmatprep.subr.mxu0 0.0
    %522 = vmatpush1.msra.mxu0 0.0
    %523 = vmatprep.subr.mxu0 0.0
    %524 = vmatpush1.msra.mxu0 0.0
    %525 = vmatprep.subr.mxu0 0.0
    %526 = vmatpush1.msra.mxu0 0.0
    %527 = vmatprep.subr.mxu0 0.0
    %528 = vmatpush1.msra.mxu0 0.0
    %529 = vmatprep.subr.mxu0 0.0
    %530 = vmatpush1.msra.mxu0 0.0
    %531 = vmatprep.subr.mxu0 0.0
    %532 = vmatpush1.msra.mxu0 0.0
    %533 = vmatprep.subr.mxu0 0.0
    %534 = vmatpush1.msra.mxu0 0.0
    %535 = vmatprep.subr.mxu0 0.0
    %536 = vmatpush1.msra.mxu0 0.0
    %537 = vmatprep.subr.mxu0 0.0
    %538 = vmatpush1.msra.mxu0 0.0
    %539 = vmatprep.subr.mxu0 0.0
    %540 = vmatpush1.msra.mxu0 0.0
    %541 = vmatprep.subr.mxu0 0.0
    %542 = vmatpush1.msra.mxu0 0.0
    %543 = vmatprep.subr.mxu0 0.0
    %544 = vmatpush1.msra.mxu0 0.0
    %545 = vmatprep.subr.mxu0 0.0
    %546 = vmatpush1.msra.mxu0 0.0
    %547 = vmatprep.subr.mxu0 0.0
    %548 = vmatpush1.msra.mxu0 0.0
    %549 = vmatprep.subr.mxu0 0.0
    %550 = vmatpush1.msra.mxu0 0.0
    %551 = vmatprep.subr.mxu0 0.0
    %552 = vmatpush1.msra.mxu0 0.0
    %553 = vmatprep.mubr.f32.mxu0 0.0
    %554 = vmatmul.mubr.f32.gmra.mrb[0].mxu0 %v465
    %v555 = vpop.f32.mrb[0].mxu0
    %v556 = vadd.f32 %v487, %v555
    %v557 = vpop.f32.mrb[0].mxu0
    %558 = vdwg.mxu0
    %559 = vst [vmem:[%s7] sm:$0xff] %v556
    // Predicated region
    $region42: #{sleep_stage_forward.1} parent=1 // pred_check
      _
    $region43: #{sleep_stage_forward.1} parent=1 // pred_check_branch
      %561 = sbr.rel (0) target = $region45
    $region44: #{sleep_stage_forward.1} parent=1 // pred_region
      _
    $region45: #{sleep_stage_forward.1} parent=1 // pred_fallthru
      _
    // Predicated region
    $region46: #{sleep_stage_forward.1} parent=1 // pred_check
      _
    $region47: #{sleep_stage_forward.1} parent=1 // pred_check_branch
      %563 = sbr.rel (0) target = $region49
    $region48: #{sleep_stage_forward.1} parent=1 // pred_region
      _
    $region49: #{sleep_stage_forward.1} parent=1 // pred_fallthru
      _
    %564 = vsyncpa [#allocation3], 1
    %565 = vsyncpa [#allocation5], 1

</llo_original>
